<compile_context>
chip_gen: v6e
topology: v6e:2x2x1
jax: 0.10.0
libtpu: 0.0.40
codegen_flags: <defaults>
</compile_context>

<pallas_src>
import math
import jax
import jax.numpy as jnp
from jax.experimental import pallas as pl
from jax.experimental.pallas import tpu as pltpu

# ---- small, module-consistent sizes -------------------------------------------------
B = 2        # batch
N = 8        # graph vertices  (adj.size(1))
H_IN = 16    # initial_hidden
D = 32       # gcn_hidden == d_model
LH = 64      # linear_hidden
BN = B * N
# nonlinearity = 'relu'

# packed-weight row offsets (all multiples of 8 so in-kernel slices stay sublane aligned)
OFF_TE1W, OFF_TE1B = 0, 32
OFF_TE2W, OFF_TE2B = 40, 168
OFF_WC1, OFF_WC2, OFF_FCW = 176, 192, 224
W_ROWS, W_COLS = 256, 128


def _normalize_adj(a):
    # torch: adj / rowsum(adj) along last dim (broadcast)
    return a / jnp.sum(a, axis=-1, keepdims=True)


def _timestep_embedding(timesteps, dim, max_positions=10000):
    half = dim // 2
    emb = math.log(max_positions) / (half - 1)
    emb = jnp.exp(jnp.arange(half, dtype=jnp.float32) * -emb)
    emb = timesteps.astype(jnp.float32)[:, None] * emb[None, :]
    return jnp.concatenate([jnp.sin(emb), jnp.cos(emb)], axis=1)  # D is even


# ---- Pallas kernel: full forward pass for the whole batch in one program ---------------
def predictor_kernel(x_ref, adj_ref, temb_ref, w_ref, out_ref):
    f32 = jnp.float32

    # --- static views into the single packed weight buffer --------------------------
    te1w = w_ref[OFF_TE1W:OFF_TE1W + D, :]                        # (32, 128)
    te1b = w_ref[OFF_TE1B:OFF_TE1B + 8, :][0:1, :]                # (1, 128)
    te2w = w_ref[OFF_TE2W:OFF_TE2W + 4 * D, 0:D]                  # (128, 32)
    te2b = w_ref[OFF_TE2B:OFF_TE2B + 8, 0:D][0:1, :]              # (1, 32)
    wc1 = w_ref[OFF_WC1:OFF_WC1 + H_IN, 0:2 * D]                  # (16, 64) = [W1 | W2] layer 0
    wc2 = w_ref[OFF_WC2:OFF_WC2 + D, 0:2 * D]                     # (32, 64) = [W1 | W2] layer 1
    fcw = w_ref[OFF_FCW:OFF_FCW + D, 0:1]                         # (32, 1)  = fc1 @ fc2 (eval fold)

    # --- block-diagonal normalized adjacencies for the whole batch ------------------
    r = jax.lax.broadcasted_iota(jnp.int32, (N, N), 0)
    c = jax.lax.broadcasted_iota(jnp.int32, (N, N), 1)
    eye = (r == c).astype(f32)
    zero = jnp.zeros((N, N), f32)
    rows = []
    for i in range(B):                                            # static unroll, B=2
        blocks = [adj_ref[i] + eye if j == i else zero for j in range(B)]
        rows.append(jnp.concatenate(blocks, axis=1))
    abd = jnp.concatenate(rows, axis=0)                           # (BN, BN) blockdiag(adj_i + I)

    # adj_with_diag = normalize_adj(adj + I); its rows sum to 1, so the per-layer
    # re-normalization norm_adj = normalize_adj(adj_with_diag) is the identity -> dropped.
    awd = abd * pl.reciprocal(jnp.sum(abd, axis=-1, keepdims=True), approx=True)
    awd_t = awd.T                                                 # blockdiag.T == per-graph transpose
    inv = awd_t * pl.reciprocal(jnp.sum(awd_t, axis=-1, keepdims=True), approx=True)
    a_stack = jnp.concatenate([awd, inv], axis=0)                 # (2*BN, BN)

    # --- 2 GCN layers; both directed branches + whole batch fused per matmul --------
    # TODO(synk): nn.Dropout(0.1) after each GCN layer is identity in eval mode; not applied.
    def gcn(h, wcat):
        hw = jnp.dot(h, wcat, preferred_element_type=f32)         # (BN, 2D): [h@W1 | h@W2]
        s = jnp.maximum(jnp.dot(a_stack, hw, preferred_element_type=f32), 0.0)   # (2BN, 2D)
        o1 = s[0:BN, 0:D]                                         # relu(norm_adj @ h @ W1)
        o2 = s[BN:2 * BN, D:2 * D]                                # relu(inv_norm_adj @ h @ W2)
        return (o1 + o2) * 0.5

    h = gcn(x_ref[...], wc1)                                      # (BN, D)
    h = gcn(h, wc2)                                               # (BN, D)

    # --- graph pooling: per-graph mean over vertices, done as one tiny matmul -------
    gi = jax.lax.broadcasted_iota(jnp.int32, (B, BN), 0)
    vj = jax.lax.broadcasted_iota(jnp.int32, (B, BN), 1)
    pool = jnp.logical_and(vj >= gi * N, vj < gi * N + N).astype(f32) * (1.0 / N)
    pooled = jnp.dot(pool, h, preferred_element_type=f32)         # (B, D)

    # --- time-embedding MLP, once for the whole batch --------------------------------
    t = temb_ref[...]                                             # (B, D)
    e = jnp.maximum(jnp.dot(t, te1w, preferred_element_type=f32) + te1b, 0.0)
    e = jnp.dot(e, te2w, preferred_element_type=f32) + te2b       # (B, D)

    # --- head: (pooled + e) @ (fc1 @ fc2); dropout between fc1/fc2 is identity (eval) -
    out_ref[...] = jnp.dot(pooled + e, fcw, preferred_element_type=f32)   # (B, 1)


# ---- wrapper: pack weights once, single pallas_call ------------------------------------
def _pack_weights(params):
    te1w, te1b, te2w, te2b, w1a, w2a, w1b, w2b, fc1, fc2 = params
    wc1 = jnp.concatenate([w1a, w2a], axis=1)                     # (H_IN, 2D)
    wc2 = jnp.concatenate([w1b, w2b], axis=1)                     # (D, 2D)
    fcw = fc1 @ fc2                                               # (D, 1) exact fold (eval mode)

    def pad(a, rows):
        return jnp.zeros((rows, W_COLS), jnp.float32).at[:a.shape[0], :a.shape[1]].set(a)

    return jnp.concatenate([
        pad(te1w, 32), pad(te1b, 8), pad(te2w, 128), pad(te2b, 8),
        pad(wc1, 16), pad(wc2, 32), pad(fcw, 32)], axis=0)        # (W_ROWS, W_COLS)


def neural_predictor(x, adj, time_cond, params):
    temb = _timestep_embedding(time_cond, D)                      # glue: sin/cos embedding
    wbuf = _pack_weights(params)                                  # one packed weight operand
    x2d = x.reshape(B * N, H_IN)                                  # graphs stacked along rows

    return pl.pallas_call(
        predictor_kernel,
        out_shape=jax.ShapeDtypeStruct((B, 1), jnp.float32),
        grid=(1,),                                                # single program, whole batch
        in_specs=[
            pl.BlockSpec((B * N, H_IN), lambda i: (0, 0)),
            pl.BlockSpec((B, N, N), lambda i: (0, 0, 0)),
            pl.BlockSpec((B, D), lambda i: (0, 0)),
            pl.BlockSpec((W_ROWS, W_COLS), lambda i: (0, 0)),
        ],
        out_specs=pl.BlockSpec((B, 1), lambda i: (0, 0)),
        compiler_params=pltpu.CompilerParams(dimension_semantics=("arbitrary",)),
    )(x2d, adj, temb, wbuf)


# ---- pure-JAX reference (original un-fused math, for validation) -----------------------
def reference(x, adj, time_cond, params):
    te1w, te1b, te2w, te2b, w1a, w2a, w1b, w2b, fc1, fc2 = params
    temb = _timestep_embedding(time_cond, D)
    e = jnp.maximum(temb @ te1w + te1b, 0.0)
    e = e @ te2w + te2b
    awd = _normalize_adj(adj + jnp.eye(N, dtype=jnp.float32))
    na = _normalize_adj(awd)
    ia = _normalize_adj(jnp.swapaxes(awd, 1, 2))
    h = x
    for w1, w2 in ((w1a, w2a), (w1b, w2b)):
        o1 = jax.nn.relu(jnp.einsum('bij,bjk->bik', na, h @ w1))
        o2 = jax.nn.relu(jnp.einsum('bij,bjk->bik', ia, h @ w2))
        h = (o1 + o2) / 2.0
    pooled = h.sum(1) / N
    z = pooled + e
    return (z @ fc1) @ fc2


# ---- deterministic parameter init ------------------------------------------------------
def init_params(key):
    ks = jax.random.split(key, 12)
    def xavier(k, shape):
        lim = math.sqrt(6.0 / (shape[0] + shape[1]))
        return jax.random.uniform(k, shape, jnp.float32, -lim, lim)
    def linear(k, fan_in, shape):
        lim = 1.0 / math.sqrt(fan_in)
        return jax.random.uniform(k, shape, jnp.float32, -lim, lim)
    te1w = linear(ks[0], D, (D, 4 * D));     te1b = linear(ks[1], D, (1, 4 * D))
    te2w = linear(ks[2], 4 * D, (4 * D, D)); te2b = linear(ks[3], 4 * D, (1, D))
    w1a = xavier(ks[4], (H_IN, D)); w2a = xavier(ks[5], (H_IN, D))
    w1b = xavier(ks[6], (D, D));    w2b = xavier(ks[7], (D, D))
    fc1 = linear(ks[8], D, (D, LH))
    fc2 = linear(ks[9], LH, (LH, 1))
    return (te1w, te1b, te2w, te2b, w1a, w2a, w1b, w2b, fc1, fc2)


if __name__ == "__main__":
    key = jax.random.PRNGKey(0)
    k_x, k_adj, k_t, k_p = jax.random.split(key, 4)
    x = jax.random.normal(k_x, (B, N, H_IN), jnp.float32)
    adj = jax.random.uniform(k_adj, (B, N, N), jnp.float32)        # non-negative adjacency
    time_cond = jax.random.uniform(k_t, (B,), jnp.float32, 0.0, 1000.0)
    params = init_params(k_p)

    out = jax.block_until_ready(neural_predictor(x, adj, time_cond, params))
    ref = reference(x, adj, time_cond, params)

    assert out.shape == (B, 1)
    # tolerance relaxed slightly vs. the exact-divide version: the kernel uses the EUP
    # approximate reciprocal for the adjacency row-sum normalizations (perf review item).
    assert jnp.allclose(out, ref, rtol=2e-3, atol=2e-3), (out, ref)
    print("KERNEL_OK")
</pallas_src>

<mosaic_0001>
module attributes {stable_mosaic.version = 11 : i64} {
  func.func @predictor_kernel(%arg0: i32, %arg1: memref<16x16xf32, #tpu.memory_space<vmem>>, %arg2: memref<2x8x8xf32, #tpu.memory_space<vmem>>, %arg3: memref<2x32xf32, #tpu.memory_space<vmem>>, %arg4: memref<256x128xf32, #tpu.memory_space<vmem>>, %arg5: memref<2x1xf32, #tpu.memory_space<vmem>>) attributes {dimension_semantics = [#tpu.dimension_semantics<arbitrary>], iteration_bounds = array<i64: 1>, scalar_prefetch = 0 : i64, scratch_operands = 0 : i64, tpu.core_type = #tpu.core_type<tc>, window_params = [{pipeline_mode = #tpu.pipeline_mode<synchronous>, transform_indices = @transform_0, window_bounds = array<i64: 16, 16>}, {pipeline_mode = #tpu.pipeline_mode<synchronous>, transform_indices = @transform_1, window_bounds = array<i64: 2, 8, 8>}, {pipeline_mode = #tpu.pipeline_mode<synchronous>, transform_indices = @transform_2, window_bounds = array<i64: 2, 32>}, {pipeline_mode = #tpu.pipeline_mode<synchronous>, transform_indices = @transform_3, window_bounds = array<i64: 256, 128>}, {pipeline_mode = #tpu.pipeline_mode<synchronous>, transform_indices = @transform_4, window_bounds = array<i64: 2, 1>}]} {
    %c0 = arith.constant 0 : index
    %c0_0 = arith.constant 0 : index
    %0 = vector.load %arg4[%c0, %c0_0] : memref<256x128xf32, #tpu.memory_space<vmem>>, vector<32x128xf32>
    %c32 = arith.constant 32 : index
    %c0_1 = arith.constant 0 : index
    %1 = vector.load %arg4[%c32, %c0_1] : memref<256x128xf32, #tpu.memory_space<vmem>>, vector<8x128xf32>
    %2 = vector.extract_strided_slice %1 {offsets = [0, 0], sizes = [1, 128], strides = [1, 1]} : vector<8x128xf32> to vector<1x128xf32>
    %c40 = arith.constant 40 : index
    %c0_2 = arith.constant 0 : index
    %3 = vector.load %arg4[%c40, %c0_2] : memref<256x128xf32, #tpu.memory_space<vmem>>, vector<128x32xf32>
    %c168 = arith.constant 168 : index
    %c0_3 = arith.constant 0 : index
    %4 = vector.load %arg4[%c168, %c0_3] : memref<256x128xf32, #tpu.memory_space<vmem>>, vector<8x32xf32>
    %5 = vector.extract_strided_slice %4 {offsets = [0, 0], sizes = [1, 32], strides = [1, 1]} : vector<8x32xf32> to vector<1x32xf32>
    %c176 = arith.constant 176 : index
    %c0_4 = arith.constant 0 : index
    %6 = vector.load %arg4[%c176, %c0_4] : memref<256x128xf32, #tpu.memory_space<vmem>>, vector<16x64xf32>
    %c192 = arith.constant 192 : index
    %c0_5 = arith.constant 0 : index
    %7 = vector.load %arg4[%c192, %c0_5] : memref<256x128xf32, #tpu.memory_space<vmem>>, vector<32x64xf32>
    %c224 = arith.constant 224 : index
    %c0_6 = arith.constant 0 : index
    %8 = vector.load %arg4[%c224, %c0_6] : memref<256x128xf32, #tpu.memory_space<vmem>>, vector<32x1xf32>
    %9 = tpu.iota {dimensions = array<i32: 0>} : vector<8x8xi32>
    %10 = tpu.iota {dimensions = array<i32: 1>} : vector<8x8xi32>
    %11 = arith.cmpi eq, %9, %10 : vector<8x8xi32>
    %12 = arith.extui %11 : vector<8x8xi1> to vector<8x8xi32>
    %13 = arith.sitofp %12 : vector<8x8xi32> to vector<8x8xf32>
    %cst = arith.constant 0.000000e+00 : f32
    %14 = vector.broadcast %cst : f32 to vector<8x8xf32>
    %c0_7 = arith.constant 0 : index
    %c0_8 = arith.constant 0 : index
    %c0_9 = arith.constant 0 : index
    %15 = vector.load %arg2[%c0_7, %c0_8, %c0_9] : memref<2x8x8xf32, #tpu.memory_space<vmem>>, vector<1x8x8xf32>
    %16 = vector.shape_cast %15 : vector<1x8x8xf32> to vector<8x8xf32>
    %17 = arith.addf %16, %13 : vector<8x8xf32>
    %18 = tpu.concatenate %17, %14 in 1 : vector<8x8xf32>, vector<8x8xf32> -> vector<8x16xf32>
    %c1 = arith.constant 1 : index
    %c0_10 = arith.constant 0 : index
    %c0_11 = arith.constant 0 : index
    %19 = vector.load %arg2[%c1, %c0_10, %c0_11] : memref<2x8x8xf32, #tpu.memory_space<vmem>>, vector<1x8x8xf32>
    %20 = vector.shape_cast %19 : vector<1x8x8xf32> to vector<8x8xf32>
    %21 = arith.addf %20, %13 : vector<8x8xf32>
    %22 = tpu.concatenate %14, %21 in 1 : vector<8x8xf32>, vector<8x8xf32> -> vector<8x16xf32>
    %23 = tpu.concatenate %18, %22 in 0 : vector<8x16xf32>, vector<8x16xf32> -> vector<16x16xf32>
    %cst_12 = arith.constant dense<0.000000e+00> : vector<16xf32>
    %24 = vector.multi_reduction <add>, %23, %cst_12 [1] : vector<16x16xf32> to vector<16xf32>
    %25 = vector.shape_cast %24 : vector<16xf32> to vector<16x1xf32>
    %26 = tpu.reciprocal %25 {approx = true} : vector<16x1xf32> -> vector<16x1xf32>
    %27 = vector.broadcast %26 : vector<16x1xf32> to vector<16x16xf32>
    %28 = arith.mulf %23, %27 : vector<16x16xf32>
    %29 = tpu.transpose %28, [1, 0] : vector<16x16xf32> -> vector<16x16xf32>
    %cst_13 = arith.constant dense<0.000000e+00> : vector<16xf32>
    %30 = vector.multi_reduction <add>, %29, %cst_13 [1] : vector<16x16xf32> to vector<16xf32>
    %31 = vector.shape_cast %30 : vector<16xf32> to vector<16x1xf32>
    %32 = tpu.reciprocal %31 {approx = true} : vector<16x1xf32> -> vector<16x1xf32>
    %33 = vector.broadcast %32 : vector<16x1xf32> to vector<16x16xf32>
    %34 = arith.mulf %29, %33 : vector<16x16xf32>
    %35 = tpu.concatenate %28, %34 in 0 : vector<16x16xf32>, vector<16x16xf32> -> vector<32x16xf32>
    %c0_14 = arith.constant 0 : index
    %c0_15 = arith.constant 0 : index
    %36 = vector.load %arg1[%c0_14, %c0_15] : memref<16x16xf32, #tpu.memory_space<vmem>>, vector<16x16xf32>
    %cst_16 = arith.constant dense<0.000000e+00> : vector<16x64xf32>
    %37 = tpu.matmul %36, %6, %cst_16 {dimension_numbers = #tpu.dot_dimension_numbers<[1], [0], [0], [1], [0, 0, 1, 1], [], []>} : vector<16x16xf32>, vector<16x64xf32>, vector<16x64xf32> -> vector<16x64xf32>
    %cst_17 = arith.constant dense<0.000000e+00> : vector<32x64xf32>
    %38 = tpu.matmul %35, %37, %cst_17 {dimension_numbers = #tpu.dot_dimension_numbers<[1], [0], [0], [1], [0, 0, 1, 1], [], []>} : vector<32x16xf32>, vector<16x64xf32>, vector<32x64xf32> -> vector<32x64xf32>
    %cst_18 = arith.constant 0.000000e+00 : f32
    %39 = vector.broadcast %cst_18 : f32 to vector<32x64xf32>
    %40 = arith.maximumf %38, %39 : vector<32x64xf32>
    %41 = vector.extract_strided_slice %40 {offsets = [0, 0], sizes = [16, 32], strides = [1, 1]} : vector<32x64xf32> to vector<16x32xf32>
    %42 = vector.extract_strided_slice %40 {offsets = [16, 32], sizes = [16, 32], strides = [1, 1]} : vector<32x64xf32> to vector<16x32xf32>
    %43 = arith.addf %41, %42 : vector<16x32xf32>
    %cst_19 = arith.constant 5.000000e-01 : f32
    %44 = vector.broadcast %cst_19 : f32 to vector<16x32xf32>
    %45 = arith.mulf %43, %44 : vector<16x32xf32>
    %cst_20 = arith.constant dense<0.000000e+00> : vector<16x64xf32>
    %46 = tpu.matmul %45, %7, %cst_20 {dimension_numbers = #tpu.dot_dimension_numbers<[1], [0], [0], [1], [0, 0, 1, 1], [], []>} : vector<16x32xf32>, vector<32x64xf32>, vector<16x64xf32> -> vector<16x64xf32>
    %cst_21 = arith.constant dense<0.000000e+00> : vector<32x64xf32>
    %47 = tpu.matmul %35, %46, %cst_21 {dimension_numbers = #tpu.dot_dimension_numbers<[1], [0], [0], [1], [0, 0, 1, 1], [], []>} : vector<32x16xf32>, vector<16x64xf32>, vector<32x64xf32> -> vector<32x64xf32>
    %cst_22 = arith.constant 0.000000e+00 : f32
    %48 = vector.broadcast %cst_22 : f32 to vector<32x64xf32>
    %49 = arith.maximumf %47, %48 : vector<32x64xf32>
    %50 = vector.extract_strided_slice %49 {offsets = [0, 0], sizes = [16, 32], strides = [1, 1]} : vector<32x64xf32> to vector<16x32xf32>
    %51 = vector.extract_strided_slice %49 {offsets = [16, 32], sizes = [16, 32], strides = [1, 1]} : vector<32x64xf32> to vector<16x32xf32>
    %52 = arith.addf %50, %51 : vector<16x32xf32>
    %cst_23 = arith.constant 5.000000e-01 : f32
    %53 = vector.broadcast %cst_23 : f32 to vector<16x32xf32>
    %54 = arith.mulf %52, %53 : vector<16x32xf32>
    %55 = tpu.iota {dimensions = array<i32: 0>} : vector<2x16xi32>
    %56 = tpu.iota {dimensions = array<i32: 1>} : vector<2x16xi32>
    %c8_i32 = arith.constant 8 : i32
    %57 = vector.broadcast %c8_i32 : i32 to vector<2x16xi32>
    %58 = arith.muli %55, %57 : vector<2x16xi32>
    %59 = arith.cmpi sge, %56, %58 : vector<2x16xi32>
    %c8_i32_24 = arith.constant 8 : i32
    %60 = vector.broadcast %c8_i32_24 : i32 to vector<2x16xi32>
    %61 = arith.muli %55, %60 : vector<2x16xi32>
    %c8_i32_25 = arith.constant 8 : i32
    %62 = vector.broadcast %c8_i32_25 : i32 to vector<2x16xi32>
    %63 = arith.addi %61, %62 : vector<2x16xi32>
    %64 = arith.cmpi slt, %56, %63 : vector<2x16xi32>
    %65 = arith.andi %59, %64 : vector<2x16xi1>
    %66 = arith.extui %65 : vector<2x16xi1> to vector<2x16xi32>
    %67 = arith.sitofp %66 : vector<2x16xi32> to vector<2x16xf32>
    %cst_26 = arith.constant 1.250000e-01 : f32
    %68 = vector.broadcast %cst_26 : f32 to vector<2x16xf32>
    %69 = arith.mulf %67, %68 : vector<2x16xf32>
    %cst_27 = arith.constant dense<0.000000e+00> : vector<2x32xf32>
    %70 = tpu.matmul %69, %54, %cst_27 {dimension_numbers = #tpu.dot_dimension_numbers<[1], [0], [0], [1], [0, 0, 1, 1], [], []>} : vector<2x16xf32>, vector<16x32xf32>, vector<2x32xf32> -> vector<2x32xf32>
    %c0_28 = arith.constant 0 : index
    %c0_29 = arith.constant 0 : index
    %71 = vector.load %arg3[%c0_28, %c0_29] : memref<2x32xf32, #tpu.memory_space<vmem>>, vector<2x32xf32>
    %cst_30 = arith.constant dense<0.000000e+00> : vector<2x128xf32>
    %72 = tpu.matmul %71, %0, %cst_30 {dimension_numbers = #tpu.dot_dimension_numbers<[1], [0], [0], [1], [0, 0, 1, 1], [], []>} : vector<2x32xf32>, vector<32x128xf32>, vector<2x128xf32> -> vector<2x128xf32>
    %73 = vector.broadcast %2 : vector<1x128xf32> to vector<2x128xf32>
    %74 = arith.addf %72, %73 : vector<2x128xf32>
    %cst_31 = arith.constant 0.000000e+00 : f32
    %75 = vector.broadcast %cst_31 : f32 to vector<2x128xf32>
    %76 = arith.maximumf %74, %75 : vector<2x128xf32>
    %cst_32 = arith.constant dense<0.000000e+00> : vector<2x32xf32>
    %77 = tpu.matmul %76, %3, %cst_32 {dimension_numbers = #tpu.dot_dimension_numbers<[1], [0], [0], [1], [0, 0, 1, 1], [], []>} : vector<2x128xf32>, vector<128x32xf32>, vector<2x32xf32> -> vector<2x32xf32>
    %78 = vector.broadcast %5 : vector<1x32xf32> to vector<2x32xf32>
    %79 = arith.addf %77, %78 : vector<2x32xf32>
    %80 = arith.addf %70, %79 : vector<2x32xf32>
    %cst_33 = arith.constant dense<0.000000e+00> : vector<2x1xf32>
    %81 = tpu.matmul %80, %8, %cst_33 {dimension_numbers = #tpu.dot_dimension_numbers<[1], [0], [0], [1], [0, 0, 1, 1], [], []>} : vector<2x32xf32>, vector<32x1xf32>, vector<2x1xf32> -> vector<2x1xf32>
    %c0_34 = arith.constant 0 : index
    %c0_35 = arith.constant 0 : index
    %82 = vector.load %arg5[%c0_34, %c0_35] : memref<2x1xf32, #tpu.memory_space<vmem>>, vector<2x1xf32>
    tpu.vector_store %arg5[%c0_34, %c0_35], %81 {strides = array<i32>} : memref<2x1xf32, #tpu.memory_space<vmem>>, vector<2x1xf32>,
    return
  }
  func.func @transform_0(%arg0: i32) -> (i32, i32) {
    %c0_i32 = arith.constant 0 : i32
    %c0_i32_0 = arith.constant 0 : i32
    %c0_i32_1 = arith.constant 0 : i32
    return %c0_i32, %c0_i32_0 : i32, i32
  }
  func.func @transform_1(%arg0: i32) -> (i32, i32, i32) {
    %c0_i32 = arith.constant 0 : i32
    %c0_i32_0 = arith.constant 0 : i32
    %c0_i32_1 = arith.constant 0 : i32
    %c0_i32_2 = arith.constant 0 : i32
    return %c0_i32, %c0_i32_0, %c0_i32_1 : i32, i32, i32
  }
  func.func @transform_2(%arg0: i32) -> (i32, i32) {
    %c0_i32 = arith.constant 0 : i32
    %c0_i32_0 = arith.constant 0 : i32
    %c0_i32_1 = arith.constant 0 : i32
    return %c0_i32, %c0_i32_0 : i32, i32
  }
  func.func @transform_3(%arg0: i32) -> (i32, i32) {
    %c0_i32 = arith.constant 0 : i32
    %c0_i32_0 = arith.constant 0 : i32
    %c0_i32_1 = arith.constant 0 : i32
    return %c0_i32, %c0_i32_0 : i32, i32
  }
  func.func @transform_4(%arg0: i32) -> (i32, i32) {
    %c0_i32 = arith.constant 0 : i32
    %c0_i32_0 = arith.constant 0 : i32
    %c0_i32_1 = arith.constant 0 : i32
    return %c0_i32, %c0_i32_0 : i32, i32
  }
}

</mosaic_0001>

<llo_original>
// kernel: tpu_custom_call.1
$region0: #{tpu_custom_call.1}
  #allocation0 [shape = 'u32[]', space=smem, size = 0x4, offset = 0x4, fixed_abs, tag = 'smem constant byte address 0x4 - core index']
  #allocation1 [shape = 'u32[144,128]{1,0:T(1,128)}', space=vmem, size = 0x12000, scoped, tag = 'internal scratch']
  %s0 = inlined_call_operand.hbm [shape: f32[16,16], index: 0, kind: input, shape index: {}]
  %s1 = inlined_call_operand.hbm [shape: f32[2,8,8], index: 1, kind: input, shape index: {}]
  %s2 = inlined_call_operand.vmem [shape: f32[2,32], index: 2, kind: input, shape index: {}]
  %s3 = inlined_call_operand.hbm [shape: f32[256,128], index: 3, kind: input, shape index: {}]
  %s4 = inlined_call_operand.vmem [shape: f32[2,1], index: 4, kind: output, shape index: {}]
  %s5 = sld [smem:[#allocation0]]
  $region38: #{tpu_custom_call.1} parent=0
    _
  %s7 = ssub.s32 1, %s5
  %s8 = scalar_select 0, %s7, %s5
  $region1: #{tpu_custom_call.1} parent=0
    #allocation2 [shape = 'u8[8192]{0}', space=vmem, size = 0x2000, scoped, tag = 'input window, operand 0, single buffered']
    #allocation3 [shape = 's32[1]{0}', space=sflag, size = 0x4, scoped, tag = 'scoped memory for tpu_custom_call.1']
    #allocation4 [shape = 'u8[8192]{0}', space=vmem, size = 0x2000, scoped, tag = 'input window, operand 1, single buffered']
    #allocation5 [shape = 's32[1]{0}', space=sflag, size = 0x4, scoped, tag = 'scoped memory for tpu_custom_call.1']
    #allocation6 [shape = 'u8[131072]{0}', space=vmem, size = 0x20000, scoped, tag = 'input window, operand 3, single buffered']
    %9 = vsyncpa [#allocation3], 0
    %10 = vsyncpa [#allocation5], 0
    // Predicated region
    $region2: #{tpu_custom_call.1} parent=1 // pred_check
      _
    $region3: #{tpu_custom_call.1} parent=1 // pred_check_branch
      %12 = sbr.rel (0) target = $region5
    $region4: #{tpu_custom_call.1} parent=1 // pred_region
      %s14 = ssub.s32 256, 256
      %15 = vsyncadd [#allocation3], %s14
      %s16 = sshll.u32 [#allocation2], 4
      %s17 = int_to_ptr.vmem [resolvable:$true] %s16
      %22 = dma.hbm_to_vmem [thread:$0]  %s0, 256, %s17, [#allocation3], 128, 128, 8
    $region5: #{tpu_custom_call.1} parent=1 // pred_fallthru
      _
    // Predicated region
    $region6: #{tpu_custom_call.1} parent=1 // pred_check
      _
    $region7: #{tpu_custom_call.1} parent=1 // pred_check_branch
      %24 = sbr.rel (0) target = $region9
    $region8: #{tpu_custom_call.1} parent=1 // pred_region
      %s26 = ssub.s32 256, 256
      %27 = vsyncadd [#allocation5], %s26
      %s28 = sshll.u32 [#allocation4], 4
      %s29 = int_to_ptr.vmem [resolvable:$true] %s28
      %34 = dma.hbm_to_vmem [thread:$0]  %s1, 256, %s29, [#allocation5], 128, 128, 8
    $region9: #{tpu_custom_call.1} parent=1 // pred_fallthru
      _
    // Predicated region
    $region10: #{tpu_custom_call.1} parent=1 // pred_check
      _
    $region11: #{tpu_custom_call.1} parent=1 // pred_check_branch
      %36 = sbr.rel (0) target = $region13
    $region12: #{tpu_custom_call.1} parent=1 // pred_region
      _
    $region13: #{tpu_custom_call.1} parent=1 // pred_fallthru
      _
    // Predicated region
    $region14: #{tpu_custom_call.1} parent=1 // pred_check
      _
    $region15: #{tpu_custom_call.1} parent=1 // pred_check_branch
      %38 = sbr.rel (0) target = $region17
    $region16: #{tpu_custom_call.1} parent=1 // pred_region
      %s40 = ssub.s32 4096, 4096
      %41 = vsyncadd [#allocation5], %s40
      %s42 = sshll.u32 [#allocation6], 4
      %s43 = int_to_ptr.vmem [resolvable:$true] %s42
      %48 = dma.hbm_to_vmem [thread:$0]  %s3, 4096, %s43, [#allocation5], 128, 128, 8
    $region17: #{tpu_custom_call.1} parent=1 // pred_fallthru
      _
    // Predicated region
    $region18: #{tpu_custom_call.1} parent=1 // pred_check
      _
    $region19: #{tpu_custom_call.1} parent=1 // pred_check_branch
      %50 = sbr.rel (0) target = $region21
    $region20: #{tpu_custom_call.1} parent=1 // pred_region
      %51 = dma.done [#allocation3], 256
    $region21: #{tpu_custom_call.1} parent=1 // pred_fallthru
      _
    // Predicated region
    $region22: #{tpu_custom_call.1} parent=1 // pred_check
      _
    $region23: #{tpu_custom_call.1} parent=1 // pred_check_branch
      %53 = sbr.rel (0) target = $region25
    $region24: #{tpu_custom_call.1} parent=1 // pred_region
      %54 = dma.done [#allocation5], 256
    $region25: #{tpu_custom_call.1} parent=1 // pred_fallthru
      _
    // Predicated region
    $region26: #{tpu_custom_call.1} parent=1 // pred_check
      _
    $region27: #{tpu_custom_call.1} parent=1 // pred_check_branch
      %56 = sbr.rel (0) target = $region29
    $region28: #{tpu_custom_call.1} parent=1 // pred_region
      %57 = dma.done [#allocation5], 4096
    $region29: #{tpu_custom_call.1} parent=1 // pred_fallthru
      _
    %v58 = vld [vmem:[#allocation6] sm:$0xff]
    %v59 = vld [vmem:[#allocation6 + $0x8] sm:$0xff]
    %v60 = vld [vmem:[#allocation6 + $0x10] sm:$0xff]
    %v61 = vld [vmem:[#allocation6 + $0x18] sm:$0xff]
    %v62 = vld [vmem:[#allocation6 + $0x20] sm:$0xff]
    %v63 = vld [vmem:[#allocation6 + $0x28] sm:$0xff]
    %v64 = vld [vmem:[#allocation6 + $0x30] sm:$0xff]
    %v65 = vld [vmem:[#allocation6 + $0x38] sm:$0xff]
    %v66 = vld [vmem:[#allocation6 + $0x40] sm:$0xff]
    %v67 = vld [vmem:[#allocation6 + $0x48] sm:$0xff]
    %v68 = vld [vmem:[#allocation6 + $0x50] sm:$0xff]
    %v69 = vld [vmem:[#allocation6 + $0x58] sm:$0xff]
    %v70 = vld [vmem:[#allocation6 + $0x60] sm:$0xff]
    %v71 = vld [vmem:[#allocation6 + $0x68] sm:$0xff]
    %v72 = vld [vmem:[#allocation6 + $0x70] sm:$0xff]
    %v73 = vld [vmem:[#allocation6 + $0x78] sm:$0xff]
    %v74 = vld [vmem:[#allocation6 + $0x80] sm:$0xff]
    %v75 = vld [vmem:[#allocation6 + $0x88] sm:$0xff]
    %v76 = vld [vmem:[#allocation6 + $0x90] sm:$0xff]
    %v77 = vld [vmem:[#allocation6 + $0x98] sm:$0xff]
    %v78 = vld [vmem:[#allocation6 + $0xa0] sm:$0xff]
    %v79 = vld [vmem:[#allocation6 + $0xa8] sm:$0xff]
    %v80 = vld [vmem:[#allocation6 + $0xb0] sm:$0xff]
    %v81 = vld [vmem:[#allocation6 + $0xb8] sm:$0xff]
    %v82 = vld [vmem:[#allocation6 + $0xc0] sm:$0xff]
    %v83 = vld [vmem:[#allocation6 + $0xc8] sm:$0xff]
    %v84 = vld [vmem:[#allocation6 + $0xd0] sm:$0xff]
    %v85 = vld [vmem:[#allocation6 + $0xd8] sm:$0xff]
    %v86 = vld [vmem:[#allocation6 + $0xe0] sm:$0xff]
    %v87 = vld [vmem:[#allocation6 + $0xe8] sm:$0xff]
    %v88 = vld [vmem:[#allocation6 + $0xf0] sm:$0xff]
    %v89 = vld [vmem:[#allocation6 + $0xf8] sm:$0xff]
    %v90 = vlaneseq
    %v91 = vshrl.u32 %v90, 7
    %v92 = vlaneseq
    %v93 = vand.u32 %v92, 127
    %vm94 = vcmp.eq.s32.totalorder %v91, %v93
    %v95 = vsel %vm94, 1, 0
    %v96 = vcvt.s32.f32 %v95
    %v97 = vld [vmem:[#allocation4] sm:$0xff]
    %v98 = vadd.f32 %v97, %v96
    %vm99 = vcmask 64512
    %v100 = vsel %vm99, %v98, 0.0
    %s101 = scalar_lea.vmem [#allocation4], 8
    %v102 = vld [vmem:[%s101] sm:$0xff]
    %v103 = vadd.f32 %v102, %v96
    %105 = vrot.lane.b32.xlu0 %v103, 8
    %v106 = vpop.permute.xlu0 %105
    %v108 = vsel %vm99, 0.0, %v106
    %vm109 = vcmask 130048
    %v110 = vsel %vm109, %v100, 0.0
    %111 = vadd.xlane.f32.xlu0 %v110
    %v112 = vpop.xlane.xlu0 %111
    %v113 = vsel %vm109, %v108, 0.0
    %114 = vadd.xlane.f32.xlu0 %v113
    %v115 = vpop.xlane.xlu0 %114
    %v116 = vrcp.pop %v112
    %v117 = vrcp.pop %v115
    %v118 = vmul.f32 %v100, %v116
    %v119 = vmul.f32 %v108, %v117
    %120 = vxpose.xlu0.b32.start [1/16] %v118, 128
    %121 = vxpose.xlu0.b32.cont [2/16] %v119, 128
    %122 = vxpose.xlu0.b32.cont [3/16] 0.0, 128
    %123 = vxpose.xlu0.b32.cont [4/16] 0.0, 128
    %124 = vxpose.xlu0.b32.cont [5/16] 0.0, 128
    %125 = vxpose.xlu0.b32.cont [6/16] 0.0, 128
    %126 = vxpose.xlu0.b32.cont [7/16] 0.0, 128
    %127 = vxpose.xlu0.b32.cont [8/16] 0.0, 128
    %128 = vxpose.xlu0.b32.cont [9/16] 0.0, 128
    %129 = vxpose.xlu0.b32.cont [10/16] 0.0, 128
    %130 = vxpose.xlu0.b32.cont [11/16] 0.0, 128
    %131 = vxpose.xlu0.b32.cont [12/16] 0.0, 128
    %132 = vxpose.xlu0.b32.cont [13/16] 0.0, 128
    %133 = vxpose.xlu0.b32.cont [14/16] 0.0, 128
    %134 = vxpose.xlu0.b32.cont [15/16] 0.0, 128
    %135 = vxpose.xlu0.b32.end [16/16] 0.0, 128
    %v136 = vpop.trf.xlu0
    %v137 = vpop.trf.xlu0
    %v138 = vpop.trf.xlu0
    %v139 = vpop.trf.xlu0
    %v140 = vpop.trf.xlu0
    %v141 = vpop.trf.xlu0
    %v142 = vpop.trf.xlu0
    %v143 = vpop.trf.xlu0
    %v144 = vpop.trf.xlu0
    %v145 = vpop.trf.xlu0
    %v146 = vpop.trf.xlu0
    %v147 = vpop.trf.xlu0
    %v148 = vpop.trf.xlu0
    %v149 = vpop.trf.xlu0
    %v150 = vpop.trf.xlu0
    %v151 = vpop.trf.xlu0
    %v152 = vsel %vm109, %v136, 0.0
    %153 = vadd.xlane.f32.xlu0 %v152
    %v154 = vpop.xlane.xlu0 %153
    %v155 = vsel %vm109, %v137, 0.0
    %156 = vadd.xlane.f32.xlu0 %v155
    %v157 = vpop.xlane.xlu0 %156
    %v158 = vrcp.pop %v154
    %v159 = vrcp.pop %v157
    %v160 = vmul.f32 %v136, %v158
    %v161 = vmul.f32 %v137, %v159
    %v162 = vld [vmem:[#allocation2] sm:$0xff]
    %v163 = vld [vmem:[#allocation2 + $0x8] sm:$0xff]
    %v165 = vsel %vm109, %v162, 0
    %v168 = vsel %vm109, %v163, 0
    %170 = vmatprep.subr.mxu0 0.0
    %171 = vmatpush1.msra.mxu0 0.0
    %172 = vmatprep.subr.mxu0 0.0
    %173 = vmatpush1.msra.mxu0 0.0
    %174 = vmatprep.subr.mxu0 0.0
    %175 = vmatpush1.msra.mxu0 0.0
    %176 = vmatprep.subr.mxu0 0.0
    %177 = vmatpush1.msra.mxu0 0.0
    %178 = vmatprep.subr.mxu0 0.0
    %179 = vmatpush1.msra.mxu0 0.0
    %180 = vmatprep.subr.mxu0 0.0
    %181 = vmatpush1.msra.mxu0 0.0
    %182 = vmatprep.subr.mxu0 0.0
    %183 = vmatpush1.msra.mxu0 0.0
    %184 = vmatprep.subr.mxu0 0.0
    %185 = vmatpush1.msra.mxu0 0.0
    %186 = vmatprep.subr.mxu0 0.0
    %187 = vmatpush1.msra.mxu0 0.0
    %188 = vmatprep.subr.mxu0 0.0
    %189 = vmatpush1.msra.mxu0 0.0
    %190 = vmatprep.subr.mxu0 0.0
    %191 = vmatpush1.msra.mxu0 0.0
    %192 = vmatprep.subr.mxu0 0.0
    %193 = vmatpush1.msra.mxu0 0.0
    %194 = vmatprep.subr.mxu0 0.0
    %195 = vmatpush1.msra.mxu0 0.0
    %196 = vmatprep.subr.mxu0 0.0
    %197 = vmatpush1.msra.mxu0 0.0
    %198 = vmatprep.subr.mxu0 0.0
    %199 = vmatpush1.msra.mxu0 %v81
    %200 = vmatprep.subr.mxu0 0.0
    %201 = vmatpush1.msra.mxu0 %v80
    %202 = vmatprep.subr.mxu0 0.0
    %203 = vmatpush2.msra.mxu0 0.0
    %204 = vmatprep.subr.mxu0 0.0
    %205 = vmatpush2.msra.mxu0 0.0
    %206 = vmatprep.subr.mxu0 0.0
    %207 = vmatpush2.msra.mxu0 0.0
    %208 = vmatprep.subr.mxu0 0.0
    %209 = vmatpush2.msra.mxu0 0.0
    %210 = vmatprep.subr.mxu0 0.0
    %211 = vmatpush2.msra.mxu0 0.0
    %212 = vmatprep.subr.mxu0 0.0
    %213 = vmatpush2.msra.mxu0 0.0
    %214 = vmatprep.subr.mxu0 0.0
    %215 = vmatpush2.msra.mxu0 0.0
    %216 = vmatprep.subr.mxu0 0.0
    %217 = vmatpush2.msra.mxu0 0.0
    %218 = vmatprep.subr.mxu0 0.0
    %219 = vmatpush2.msra.mxu0 0.0
    %220 = vmatprep.subr.mxu0 0.0
    %221 = vmatpush2.msra.mxu0 0.0
    %222 = vmatprep.subr.mxu0 0.0
    %223 = vmatpush2.msra.mxu0 0.0
    %224 = vmatprep.subr.mxu0 0.0
    %225 = vmatpush2.msra.mxu0 0.0
    %226 = vmatprep.subr.mxu0 0.0
    %227 = vmatpush2.msra.mxu0 0.0
    %228 = vmatprep.subr.mxu0 0.0
    %229 = vmatpush2.msra.mxu0 0.0
    %230 = vmatprep.subr.mxu0 0.0
    %231 = vmatpush2.msra.mxu0 0.0
    %232 = vmatprep.subr.mxu0 0.0
    %233 = vmatpush2.msra.mxu0 0.0
    %234 = vmatprep.mubr.f32.mxu0 0.0
    %235 = vmatmul.mubr.f32.gmra.mxu0 %v165
    %v236 = vpop.f32.mrf.mxu0
    %v237 = vadd.f32 0.0, %v236
    %v238 = vpop.f32.mrf.mxu0
    %239 = vmatprep.mubr.f32.mxu0 0.0
    %240 = vmatmul.mubr.f32.gmra.mxu0 %v168
    %v241 = vpop.f32.mrf.mxu0
    %v242 = vadd.f32 0.0, %v241
    %v243 = vpop.f32.mrf.mxu0
    %244 = vdwg.mxu0
    %v246 = vsel %vm109, %v118, 0
    %v249 = vsel %vm109, %v119, 0
    %v252 = vsel %vm109, %v160, 0
    %v255 = vsel %vm109, %v161, 0
    %257 = vmatprep.subr.mxu0 0.0
    %258 = vmatpush1.msra.mxu0 0.0
    %259 = vmatprep.subr.mxu0 0.0
    %260 = vmatpush1.msra.mxu0 0.0
    %261 = vmatprep.subr.mxu0 0.0
    %262 = vmatpush1.msra.mxu0 0.0
    %263 = vmatprep.subr.mxu0 0.0
    %264 = vmatpush1.msra.mxu0 0.0
    %265 = vmatprep.subr.mxu0 0.0
    %266 = vmatpush1.msra.mxu0 0.0
    %267 = vmatprep.subr.mxu0 0.0
    %268 = vmatpush1.msra.mxu0 0.0
    %269 = vmatprep.subr.mxu0 0.0
    %270 = vmatpush1.msra.mxu0 0.0
    %271 = vmatprep.subr.mxu0 0.0
    %272 = vmatpush1.msra.mxu0 0.0
    %273 = vmatprep.subr.mxu0 0.0
    %274 = vmatpush1.msra.mxu0 0.0
    %275 = vmatprep.subr.mxu0 0.0
    %276 = vmatpush1.msra.mxu0 0.0
    %277 = vmatprep.subr.mxu0 0.0
    %278 = vmatpush1.msra.mxu0 0.0
    %279 = vmatprep.subr.mxu0 0.0
    %280 = vmatpush1.msra.mxu0 0.0
    %281 = vmatprep.subr.mxu0 0.0
    %282 = vmatpush1.msra.mxu0 0.0
    %283 = vmatprep.subr.mxu0 0.0
    %284 = vmatpush1.msra.mxu0 0.0
    %285 = vmatprep.subr.mxu0 0.0
    %286 = vmatpush1.msra.mxu0 %v242
    %287 = vmatprep.subr.mxu0 0.0
    %288 = vmatpush1.msra.mxu0 %v237
    %289 = vmatprep.subr.mxu0 0.0
    %290 = vmatpush2.msra.mxu0 0.0
    %291 = vmatprep.subr.mxu0 0.0
    %292 = vmatpush2.msra.mxu0 0.0
    %293 = vmatprep.subr.mxu0 0.0
    %294 = vmatpush2.msra.mxu0 0.0
    %295 = vmatprep.subr.mxu0 0.0
    %296 = vmatpush2.msra.mxu0 0.0
    %297 = vmatprep.subr.mxu0 0.0
    %298 = vmatpush2.msra.mxu0 0.0
    %299 = vmatprep.subr.mxu0 0.0
    %300 = vmatpush2.msra.mxu0 0.0
    %301 = vmatprep.subr.mxu0 0.0
    %302 = vmatpush2.msra.mxu0 0.0
    %303 = vmatprep.subr.mxu0 0.0
    %304 = vmatpush2.msra.mxu0 0.0
    %305 = vmatprep.subr.mxu0 0.0
    %306 = vmatpush2.msra.mxu0 0.0
    %307 = vmatprep.subr.mxu0 0.0
    %308 = vmatpush2.msra.mxu0 0.0
    %309 = vmatprep.subr.mxu0 0.0
    %310 = vmatpush2.msra.mxu0 0.0
    %311 = vmatprep.subr.mxu0 0.0
    %312 = vmatpush2.msra.mxu0 0.0
    %313 = vmatprep.subr.mxu0 0.0
    %314 = vmatpush2.msra.mxu0 0.0
    %315 = vmatprep.subr.mxu0 0.0
    %316 = vmatpush2.msra.mxu0 0.0
    %317 = vmatprep.subr.mxu0 0.0
    %318 = vmatpush2.msra.mxu0 0.0
    %319 = vmatprep.subr.mxu0 0.0
    %320 = vmatpush2.msra.mxu0 0.0
    %321 = vmatprep.mubr.f32.mxu0 0.0
    %322 = vmatmul.mubr.f32.gmra.mxu0 %v246
    %v323 = vpop.f32.mrf.mxu0
    %v324 = vadd.f32 0.0, %v323
    %v325 = vpop.f32.mrf.mxu0
    %326 = vmatprep.mubr.f32.mxu0 0.0
    %327 = vmatmul.mubr.f32.gmra.mxu0 %v249
    %v328 = vpop.f32.mrf.mxu0
    %v329 = vadd.f32 0.0, %v328
    %v330 = vpop.f32.mrf.mxu0
    %331 = vmatprep.mubr.f32.mxu0 0.0
    %332 = vmatmul.mubr.f32.gmra.mxu0 %v252
    %v333 = vpop.f32.mrf.mxu0
    %v334 = vadd.f32 0.0, %v333
    %v335 = vpop.f32.mrf.mxu0
    %336 = vmatprep.mubr.f32.mxu0 0.0
    %337 = vmatmul.mubr.f32.gmra.mxu0 %v255
    %v338 = vpop.f32.mrf.mxu0
    %v339 = vadd.f32 0.0, %v338
    %v340 = vpop.f32.mrf.mxu0
    %341 = vdwg.mxu0
    %v342 = vmax.f32 %v324, 0.0
    %v343 = vmax.f32 %v329, 0.0
    %v344 = vmax.f32 %v334, 0.0
    %v345 = vmax.f32 %v339, 0.0
    %348 = vrot.lane.b32.xlu0 %v344, 96
    %v349 = vpop.permute.xlu0 %348
    %350 = vrot.lane.b32.xlu0 %v345, 96
    %v351 = vpop.permute.xlu0 %350
    %v354 = vadd.f32 %v342, %v349
    %v355 = vadd.f32 %v343, %v351
    %v356 = vmul.f32 %v354, 0.5
    %v357 = vmul.f32 %v355, 0.5
    %vm358 = vcmask 261120
    %v360 = vsel %vm358, %v356, 0
    %v363 = vsel %vm358, %v357, 0
    %365 = vmatprep.subr.mxu0 0.0
    %366 = vmatpush1.msra.mxu0 0.0
    %367 = vmatprep.subr.mxu0 0.0
    %368 = vmatpush1.msra.mxu0 0.0
    %369 = vmatprep.subr.mxu0 0.0
    %370 = vmatpush1.msra.mxu0 0.0
    %371 = vmatprep.subr.mxu0 0.0
    %372 = vmatpush1.msra.mxu0 0.0
    %373 = vmatprep.subr.mxu0 0.0
    %374 = vmatpush1.msra.mxu0 0.0
    %375 = vmatprep.subr.mxu0 0.0
    %376 = vmatpush1.msra.mxu0 0.0
    %377 = vmatprep.subr.mxu0 0.0
    %378 = vmatpush1.msra.mxu0 0.0
    %379 = vmatprep.subr.mxu0 0.0
    %380 = vmatpush1.msra.mxu0 0.0
    %381 = vmatprep.subr.mxu0 0.0
    %382 = vmatpush1.msra.mxu0 0.0
    %383 = vmatprep.subr.mxu0 0.0
    %384 = vmatpush1.msra.mxu0 0.0
    %385 = vmatprep.subr.mxu0 0.0
    %386 = vmatpush1.msra.mxu0 0.0
    %387 = vmatprep.subr.mxu0 0.0
    %388 = vmatpush1.msra.mxu0 0.0
    %389 = vmatprep.subr.mxu0 0.0
    %390 = vmatpush1.msra.mxu0 %v85
    %391 = vmatprep.subr.mxu0 0.0
    %392 = vmatpush1.msra.mxu0 %v84
    %393 = vmatprep.subr.mxu0 0.0
    %394 = vmatpush1.msra.mxu0 %v83
    %395 = vmatprep.subr.mxu0 0.0
    %396 = vmatpush1.msra.mxu0 %v82
    %397 = vmatprep.subr.mxu0 0.0
    %398 = vmatpush2.msra.mxu0 0.0
    %399 = vmatprep.subr.mxu0 0.0
    %400 = vmatpush2.msra.mxu0 0.0
    %401 = vmatprep.subr.mxu0 0.0
    %402 = vmatpush2.msra.mxu0 0.0
    %403 = vmatprep.subr.mxu0 0.0
    %404 = vmatpush2.msra.mxu0 0.0
    %405 = vmatprep.subr.mxu0 0.0
    %406 = vmatpush2.msra.mxu0 0.0
    %407 = vmatprep.subr.mxu0 0.0
    %408 = vmatpush2.msra.mxu0 0.0
    %409 = vmatprep.subr.mxu0 0.0
    %410 = vmatpush2.msra.mxu0 0.0
    %411 = vmatprep.subr.mxu0 0.0
    %412 = vmatpush2.msra.mxu0 0.0
    %413 = vmatprep.subr.mxu0 0.0
    %414 = vmatpush2.msra.mxu0 0.0
    %415 = vmatprep.subr.mxu0 0.0
    %416 = vmatpush2.msra.mxu0 0.0
    %417 = vmatprep.subr.mxu0 0.0
    %418 = vmatpush2.msra.mxu0 0.0
    %419 = vmatprep.subr.mxu0 0.0
    %420 = vmatpush2.msra.mxu0 0.0
    %421 = vmatprep.subr.mxu0 0.0
    %422 = vmatpush2.msra.mxu0 0.0
    %423 = vmatprep.subr.mxu0 0.0
    %424 = vmatpush2.msra.mxu0 0.0
    %425 = vmatprep.subr.mxu0 0.0
    %426 = vmatpush2.msra.mxu0 0.0
    %427 = vmatprep.subr.mxu0 0.0
    %428 = vmatpush2.msra.mxu0 0.0
    %429 = vmatprep.mubr.f32.mxu0 0.0
    %430 = vmatmul.mubr.f32.gmra.mxu0 %v360
    %v431 = vpop.f32.mrf.mxu0
    %v432 = vadd.f32 0.0, %v431
    %v433 = vpop.f32.mrf.mxu0
    %434 = vmatprep.mubr.f32.mxu0 0.0
    %435 = vmatmul.mubr.f32.gmra.mxu0 %v363
    %v436 = vpop.f32.mrf.mxu0
    %v437 = vadd.f32 0.0, %v436
    %v438 = vpop.f32.mrf.mxu0
    %439 = vdwg.mxu0
    %440 = vmatprep.subr.mxu0 0.0
    %441 = vmatpush1.msra.mxu0 0.0
    %442 = vmatprep.subr.mxu0 0.0
    %443 = vmatpush1.msra.mxu0 0.0
    %444 = vmatprep.subr.mxu0 0.0
    %445 = vmatpush1.msra.mxu0 0.0
    %446 = vmatprep.subr.mxu0 0.0
    %447 = vmatpush1.msra.mxu0 0.0
    %448 = vmatprep.subr.mxu0 0.0
    %449 = vmatpush1.msra.mxu0 0.0
    %450 = vmatprep.subr.mxu0 0.0
    %451 = vmatpush1.msra.mxu0 0.0
    %452 = vmatprep.subr.mxu0 0.0
    %453 = vmatpush1.msra.mxu0 0.0
    %454 = vmatprep.subr.mxu0 0.0
    %455 = vmatpush1.msra.mxu0 0.0
    %456 = vmatprep.subr.mxu0 0.0
    %457 = vmatpush1.msra.mxu0 0.0
    %458 = vmatprep.subr.mxu0 0.0
    %459 = vmatpush1.msra.mxu0 0.0
    %460 = vmatprep.subr.mxu0 0.0
    %461 = vmatpush1.msra.mxu0 0.0
    %462 = vmatprep.subr.mxu0 0.0
    %463 = vmatpush1.msra.mxu0 0.0
    %464 = vmatprep.subr.mxu0 0.0
    %465 = vmatpush1.msra.mxu0 0.0
    %466 = vmatprep.subr.mxu0 0.0
    %467 = vmatpush1.msra.mxu0 0.0
    %468 = vmatprep.subr.mxu0 0.0
    %469 = vmatpush1.msra.mxu0 %v437
    %470 = vmatprep.subr.mxu0 0.0
    %471 = vmatpush1.msra.mxu0 %v432
    %472 = vmatprep.subr.mxu0 0.0
    %473 = vmatpush2.msra.mxu0 0.0
    %474 = vmatprep.subr.mxu0 0.0
    %475 = vmatpush2.msra.mxu0 0.0
    %476 = vmatprep.subr.mxu0 0.0
    %477 = vmatpush2.msra.mxu0 0.0
    %478 = vmatprep.subr.mxu0 0.0
    %479 = vmatpush2.msra.mxu0 0.0
    %480 = vmatprep.subr.mxu0 0.0
    %481 = vmatpush2.msra.mxu0 0.0
    %482 = vmatprep.subr.mxu0 0.0
    %483 = vmatpush2.msra.mxu0 0.0
    %484 = vmatprep.subr.mxu0 0.0
    %485 = vmatpush2.msra.mxu0 0.0
    %486 = vmatprep.subr.mxu0 0.0
    %487 = vmatpush2.msra.mxu0 0.0
    %488 = vmatprep.subr.mxu0 0.0
    %489 = vmatpush2.msra.mxu0 0.0
    %490 = vmatprep.subr.mxu0 0.0
    %491 = vmatpush2.msra.mxu0 0.0
    %492 = vmatprep.subr.mxu0 0.0
    %493 = vmatpush2.msra.mxu0 0.0
    %494 = vmatprep.subr.mxu0 0.0
    %495 = vmatpush2.msra.mxu0 0.0
    %496 = vmatprep.subr.mxu0 0.0
    %497 = vmatpush2.msra.mxu0 0.0
    %498 = vmatprep.subr.mxu0 0.0
    %499 = vmatpush2.msra.mxu0 0.0
    %500 = vmatprep.subr.mxu0 0.0
    %501 = vmatpush2.msra.mxu0 0.0
    %502 = vmatprep.subr.mxu0 0.0
    %503 = vmatpush2.msra.mxu0 0.0
    %504 = vmatprep.mubr.f32.mxu0 0.0
    %505 = vmatmul.mubr.f32.gmra.mxu0 %v246
    %v506 = vpop.f32.mrf.mxu0
    %v507 = vadd.f32 0.0, %v506
    %v508 = vpop.f32.mrf.mxu0
    %509 = vmatprep.mubr.f32.mxu0 0.0
    %510 = vmatmul.mubr.f32.gmra.mxu0 %v249
    %v511 = vpop.f32.mrf.mxu0
    %v512 = vadd.f32 0.0, %v511
    %v513 = vpop.f32.mrf.mxu0
    %514 = vmatprep.mubr.f32.mxu0 0.0
    %515 = vmatmul.mubr.f32.gmra.mxu0 %v252
    %v516 = vpop.f32.mrf.mxu0
    %v517 = vadd.f32 0.0, %v516
    %v518 = vpop.f32.mrf.mxu0
    %519 = vmatprep.mubr.f32.mxu0 0.0
    %520 = vmatmul.mubr.f32.gmra.mxu0 %v255
    %v521 = vpop.f32.mrf.mxu0
    %v522 = vadd.f32 0.0, %v521
    %v523 = vpop.f32.mrf.mxu0
    %524 = vdwg.mxu0
    %v525 = vmax.f32 %v507, 0.0
    %v526 = vmax.f32 %v512, 0.0
    %v527 = vmax.f32 %v517, 0.0
    %v528 = vmax.f32 %v522, 0.0
    %531 = vrot.lane.b32.xlu0 %v527, 96
    %v532 = vpop.permute.xlu0 %531
    %533 = vrot.lane.b32.xlu0 %v528, 96
    %v534 = vpop.permute.xlu0 %533
    %v537 = vadd.f32 %v525, %v532
    %v538 = vadd.f32 %v526, %v534
    %v539 = vmul.f32 %v537, 0.5
    %v540 = vmul.f32 %v538, 0.5
    %v541 = vmul.u32 %v91, 8
    %vm542 = vcmp.ge.s32.totalorder %v93, %v541
    %v543 = vadd.s32 %v541, 8
    %vm544 = vcmp.lt.s32.totalorder %v93, %v543
    %vm545 = vmand %vm542, %vm544
    %v546 = vsel %vm545, 1, 0
    %v547 = vcvt.s32.f32 %v546
    %v548 = vmul.f32 %v547, 0.125
    %v549 = vld [vmem:[%s2] sm:$0x3]
    %v550 = vlaneseq
    %v551 = vshrl.u32 %v550, 7
    %v552 = vsub.s32 0, %v551
    %v553 = vrot.slane %v62, %v552
    %v555 = vsel %vm358, %v549, 0
    %557 = vmatprep.subr.mxu0 0.0
    %558 = vmatpush1.msra.mxu0 0.0
    %559 = vmatprep.subr.mxu0 0.0
    %560 = vmatpush1.msra.mxu0 0.0
    %561 = vmatprep.subr.mxu0 0.0
    %562 = vmatpush1.msra.mxu0 0.0
    %563 = vmatprep.subr.mxu0 0.0
    %564 = vmatpush1.msra.mxu0 0.0
    %565 = vmatprep.subr.mxu0 0.0
    %566 = vmatpush1.msra.mxu0 0.0
    %567 = vmatprep.subr.mxu0 0.0
    %568 = vmatpush1.msra.mxu0 0.0
    %569 = vmatprep.subr.mxu0 0.0
    %570 = vmatpush1.msra.mxu0 0.0
    %571 = vmatprep.subr.mxu0 0.0
    %572 = vmatpush1.msra.mxu0 0.0
    %573 = vmatprep.subr.mxu0 0.0
    %574 = vmatpush1.msra.mxu0 0.0
    %575 = vmatprep.subr.mxu0 0.0
    %576 = vmatpush1.msra.mxu0 0.0
    %577 = vmatprep.subr.mxu0 0.0
    %578 = vmatpush1.msra.mxu0 0.0
    %579 = vmatprep.subr.mxu0 0.0
    %580 = vmatpush1.msra.mxu0 0.0
    %581 = vmatprep.subr.mxu0 0.0
    %582 = vmatpush1.msra.mxu0 %v61
    %583 = vmatprep.subr.mxu0 0.0
    %584 = vmatpush1.msra.mxu0 %v60
    %585 = vmatprep.subr.mxu0 0.0
    %586 = vmatpush1.msra.mxu0 %v59
    %587 = vmatprep.subr.mxu0 0.0
    %588 = vmatpush1.msra.mxu0 %v58
    %589 = vmatprep.subr.mxu0 0.0
    %590 = vmatpush2.msra.mxu0 0.0
    %591 = vmatprep.subr.mxu0 0.0
    %592 = vmatpush2.msra.mxu0 0.0
    %593 = vmatprep.subr.mxu0 0.0
    %594 = vmatpush2.msra.mxu0 0.0
    %595 = vmatprep.subr.mxu0 0.0
    %596 = vmatpush2.msra.mxu0 0.0
    %597 = vmatprep.subr.mxu0 0.0
    %598 = vmatpush2.msra.mxu0 0.0
    %599 = vmatprep.subr.mxu0 0.0
    %600 = vmatpush2.msra.mxu0 0.0
    %601 = vmatprep.subr.mxu0 0.0
    %602 = vmatpush2.msra.mxu0 0.0
    %603 = vmatprep.subr.mxu0 0.0
    %604 = vmatpush2.msra.mxu0 0.0
    %605 = vmatprep.subr.mxu0 0.0
    %606 = vmatpush2.msra.mxu0 0.0
    %607 = vmatprep.subr.mxu0 0.0
    %608 = vmatpush2.msra.mxu0 0.0
    %609 = vmatprep.subr.mxu0 0.0
    %610 = vmatpush2.msra.mxu0 0.0
    %611 = vmatprep.subr.mxu0 0.0
    %612 = vmatpush2.msra.mxu0 0.0
    %613 = vmatprep.subr.mxu0 0.0
    %614 = vmatpush2.msra.mxu0 0.0
    %615 = vmatprep.subr.mxu0 0.0
    %616 = vmatpush2.msra.mxu0 0.0
    %617 = vmatprep.subr.mxu0 0.0
    %618 = vmatpush2.msra.mxu0 0.0
    %619 = vmatprep.subr.mxu0 0.0
    %620 = vmatpush2.msra.mxu0 0.0
    %621 = vmatprep.mubr.f32.mxu0 0.0
    %622 = vmatmul.mubr.f32.gmra.mxu0 %v555
    %v623 = vpop.f32.mrf.mxu0
    %v624 = vadd.f32 %v553, %v623
    %v625 = vpop.f32.mrf.mxu0
    %626 = vdwg.mxu0
    %v627 = vmax.f32 %v624, 0.0
    %v628 = vlaneseq
    %v629 = vshrl.u32 %v628, 7
    %v630 = vsub.s32 0, %v629
    %v631 = vrot.slane %v79, %v630
    %632 = vmatprep.subr.mxu0 0.0
    %633 = vmatpush1.msra.mxu0 %v78
    %634 = vmatprep.subr.mxu0 0.0
    %635 = vmatpush1.msra.mxu0 %v77
    %636 = vmatprep.subr.mxu0 0.0
    %637 = vmatpush1.msra.mxu0 %v76
    %638 = vmatprep.subr.mxu0 0.0
    %639 = vmatpush1.msra.mxu0 %v75
    %640 = vmatprep.subr.mxu0 0.0
    %641 = vmatpush1.msra.mxu0 %v74
    %642 = vmatprep.subr.mxu0 0.0
    %643 = vmatpush1.msra.mxu0 %v73
    %644 = vmatprep.subr.mxu0 0.0
    %645 = vmatpush1.msra.mxu0 %v72
    %646 = vmatprep.subr.mxu0 0.0
    %647 = vmatpush1.msra.mxu0 %v71
    %648 = vmatprep.subr.mxu0 0.0
    %649 = vmatpush1.msra.mxu0 %v70
    %650 = vmatprep.subr.mxu0 0.0
    %651 = vmatpush1.msra.mxu0 %v69
    %652 = vmatprep.subr.mxu0 0.0
    %653 = vmatpush1.msra.mxu0 %v68
    %654 = vmatprep.subr.mxu0 0.0
    %655 = vmatpush1.msra.mxu0 %v67
    %656 = vmatprep.subr.mxu0 0.0
    %657 = vmatpush1.msra.mxu0 %v66
    %658 = vmatprep.subr.mxu0 0.0
    %659 = vmatpush1.msra.mxu0 %v65
    %660 = vmatprep.subr.mxu0 0.0
    %661 = vmatpush1.msra.mxu0 %v64
    %662 = vmatprep.subr.mxu0 0.0
    %663 = vmatpush1.msra.mxu0 %v63
    %664 = vmatprep.subr.mxu0 0.0
    %665 = vmatpush2.msra.mxu0 0.0
    %666 = vmatprep.subr.mxu0 0.0
    %667 = vmatpush2.msra.mxu0 0.0
    %668 = vmatprep.subr.mxu0 0.0
    %669 = vmatpush2.msra.mxu0 0.0
    %670 = vmatprep.subr.mxu0 0.0
    %671 = vmatpush2.msra.mxu0 0.0
    %672 = vmatprep.subr.mxu0 0.0
    %673 = vmatpush2.msra.mxu0 0.0
    %674 = vmatprep.subr.mxu0 0.0
    %675 = vmatpush2.msra.mxu0 0.0
    %676 = vmatprep.subr.mxu0 0.0
    %677 = vmatpush2.msra.mxu0 0.0
    %678 = vmatprep.subr.mxu0 0.0
    %679 = vmatpush2.msra.mxu0 0.0
    %680 = vmatprep.subr.mxu0 0.0
    %681 = vmatpush2.msra.mxu0 0.0
    %682 = vmatprep.subr.mxu0 0.0
    %683 = vmatpush2.msra.mxu0 0.0
    %684 = vmatprep.subr.mxu0 0.0
    %685 = vmatpush2.msra.mxu0 0.0
    %686 = vmatprep.subr.mxu0 0.0
    %687 = vmatpush2.msra.mxu0 0.0
    %688 = vmatprep.subr.mxu0 0.0
    %689 = vmatpush2.msra.mxu0 0.0
    %690 = vmatprep.subr.mxu0 0.0
    %691 = vmatpush2.msra.mxu0 0.0
    %692 = vmatprep.subr.mxu0 0.0
    %693 = vmatpush2.msra.mxu0 0.0
    %694 = vmatprep.subr.mxu0 0.0
    %695 = vmatpush2.msra.mxu0 0.0
    %696 = vmatprep.mubr.f32.mxu0 0.0
    %697 = vmatmul.mubr.f32.gmra.mxu0 %v627
    %v698 = vpop.f32.mrf.mxu0
    %v699 = vadd.f32 %v631, %v698
    %v700 = vpop.f32.mrf.mxu0
    %701 = vdwg.mxu0
    %v703 = vsel %vm109, %v548, 0
    %705 = vmatprep.subr.mxu0 0.0
    %706 = vmatpush1.msra.mxu0 0.0
    %707 = vmatprep.subr.mxu0 0.0
    %708 = vmatpush1.msra.mxu0 0.0
    %709 = vmatprep.subr.mxu0 0.0
    %710 = vmatpush1.msra.mxu0 0.0
    %711 = vmatprep.subr.mxu0 0.0
    %712 = vmatpush1.msra.mxu0 0.0
    %713 = vmatprep.subr.mxu0 0.0
    %714 = vmatpush1.msra.mxu0 0.0
    %715 = vmatprep.subr.mxu0 0.0
    %716 = vmatpush1.msra.mxu0 0.0
    %717 = vmatprep.subr.mxu0 0.0
    %718 = vmatpush1.msra.mxu0 0.0
    %719 = vmatprep.subr.mxu0 0.0
    %720 = vmatpush1.msra.mxu0 0.0
    %721 = vmatprep.subr.mxu0 0.0
    %722 = vmatpush1.msra.mxu0 0.0
    %723 = vmatprep.subr.mxu0 0.0
    %724 = vmatpush1.msra.mxu0 0.0
    %725 = vmatprep.subr.mxu0 0.0
    %726 = vmatpush1.msra.mxu0 0.0
    %727 = vmatprep.subr.mxu0 0.0
    %728 = vmatpush1.msra.mxu0 0.0
    %729 = vmatprep.subr.mxu0 0.0
    %730 = vmatpush1.msra.mxu0 0.0
    %731 = vmatprep.subr.mxu0 0.0
    %732 = vmatpush1.msra.mxu0 0.0
    %733 = vmatprep.subr.mxu0 0.0
    %734 = vmatpush1.msra.mxu0 %v540
    %735 = vmatprep.subr.mxu0 0.0
    %736 = vmatpush1.msra.mxu0 %v539
    %737 = vmatprep.subr.mxu0 0.0
    %738 = vmatpush2.msra.mxu0 0.0
    %739 = vmatprep.subr.mxu0 0.0
    %740 = vmatpush2.msra.mxu0 0.0
    %741 = vmatprep.subr.mxu0 0.0
    %742 = vmatpush2.msra.mxu0 0.0
    %743 = vmatprep.subr.mxu0 0.0
    %744 = vmatpush2.msra.mxu0 0.0
    %745 = vmatprep.subr.mxu0 0.0
    %746 = vmatpush2.msra.mxu0 0.0
    %747 = vmatprep.subr.mxu0 0.0
    %748 = vmatpush2.msra.mxu0 0.0
    %749 = vmatprep.subr.mxu0 0.0
    %750 = vmatpush2.msra.mxu0 0.0
    %751 = vmatprep.subr.mxu0 0.0
    %752 = vmatpush2.msra.mxu0 0.0
    %753 = vmatprep.subr.mxu0 0.0
    %754 = vmatpush2.msra.mxu0 0.0
    %755 = vmatprep.subr.mxu0 0.0
    %756 = vmatpush2.msra.mxu0 0.0
    %757 = vmatprep.subr.mxu0 0.0
    %758 = vmatpush2.msra.mxu0 0.0
    %759 = vmatprep.subr.mxu0 0.0
    %760 = vmatpush2.msra.mxu0 0.0
    %761 = vmatprep.subr.mxu0 0.0
    %762 = vmatpush2.msra.mxu0 0.0
    %763 = vmatprep.subr.mxu0 0.0
    %764 = vmatpush2.msra.mxu0 0.0
    %765 = vmatprep.subr.mxu0 0.0
    %766 = vmatpush2.msra.mxu0 0.0
    %767 = vmatprep.subr.mxu0 0.0
    %768 = vmatpush2.msra.mxu0 0.0
    %769 = vmatprep.mubr.f32.mxu0 0.0
    %770 = vmatmul.mubr.f32.gmra.mxu0 %v703
    %v771 = vpop.f32.mrf.mxu0
    %v772 = vadd.f32 %v699, %v771
    %v773 = vpop.f32.mrf.mxu0
    %774 = vdwg.mxu0
    %v776 = vsel %vm358, %v772, 0
    %778 = vmatprep.subr.mxu0 0.0
    %779 = vmatpush1.msra.mxu0 0.0
    %780 = vmatprep.subr.mxu0 0.0
    %781 = vmatpush1.msra.mxu0 0.0
    %782 = vmatprep.subr.mxu0 0.0
    %783 = vmatpush1.msra.mxu0 0.0
    %784 = vmatprep.subr.mxu0 0.0
    %785 = vmatpush1.msra.mxu0 0.0
    %786 = vmatprep.subr.mxu0 0.0
    %787 = vmatpush1.msra.mxu0 0.0
    %788 = vmatprep.subr.mxu0 0.0
    %789 = vmatpush1.msra.mxu0 0.0
    %790 = vmatprep.subr.mxu0 0.0
    %791 = vmatpush1.msra.mxu0 0.0
    %792 = vmatprep.subr.mxu0 0.0
    %793 = vmatpush1.msra.mxu0 0.0
    %794 = vmatprep.subr.mxu0 0.0
    %795 = vmatpush1.msra.mxu0 0.0
    %796 = vmatprep.subr.mxu0 0.0
    %797 = vmatpush1.msra.mxu0 0.0
    %798 = vmatprep.subr.mxu0 0.0
    %799 = vmatpush1.msra.mxu0 0.0
    %800 = vmatprep.subr.mxu0 0.0
    %801 = vmatpush1.msra.mxu0 0.0
    %802 = vmatprep.subr.mxu0 0.0
    %803 = vmatpush1.msra.mxu0 %v89
    %804 = vmatprep.subr.mxu0 0.0
    %805 = vmatpush1.msra.mxu0 %v88
    %806 = vmatprep.subr.mxu0 0.0
    %807 = vmatpush1.msra.mxu0 %v87
    %808 = vmatprep.subr.mxu0 0.0
    %809 = vmatpush1.msra.mxu0 %v86
    %810 = vmatprep.subr.mxu0 0.0
    %811 = vmatpush2.msra.mxu0 0.0
    %812 = vmatprep.subr.mxu0 0.0
    %813 = vmatpush2.msra.mxu0 0.0
    %814 = vmatprep.subr.mxu0 0.0
    %815 = vmatpush2.msra.mxu0 0.0
    %816 = vmatprep.subr.mxu0 0.0
    %817 = vmatpush2.msra.mxu0 0.0
    %818 = vmatprep.subr.mxu0 0.0
    %819 = vmatpush2.msra.mxu0 0.0
    %820 = vmatprep.subr.mxu0 0.0
    %821 = vmatpush2.msra.mxu0 0.0
    %822 = vmatprep.subr.mxu0 0.0
    %823 = vmatpush2.msra.mxu0 0.0
    %824 = vmatprep.subr.mxu0 0.0
    %825 = vmatpush2.msra.mxu0 0.0
    %826 = vmatprep.subr.mxu0 0.0
    %827 = vmatpush2.msra.mxu0 0.0
    %828 = vmatprep.subr.mxu0 0.0
    %829 = vmatpush2.msra.mxu0 0.0
    %830 = vmatprep.subr.mxu0 0.0
    %831 = vmatpush2.msra.mxu0 0.0
    %832 = vmatprep.subr.mxu0 0.0
    %833 = vmatpush2.msra.mxu0 0.0
    %834 = vmatprep.subr.mxu0 0.0
    %835 = vmatpush2.msra.mxu0 0.0
    %836 = vmatprep.subr.mxu0 0.0
    %837 = vmatpush2.msra.mxu0 0.0
    %838 = vmatprep.subr.mxu0 0.0
    %839 = vmatpush2.msra.mxu0 0.0
    %840 = vmatprep.subr.mxu0 0.0
    %841 = vmatpush2.msra.mxu0 0.0
    %842 = vmatprep.mubr.f32.mxu0 0.0
    %843 = vmatmul.mubr.f32.gmra.mxu0 %v776
    %v844 = vpop.f32.mrf.mxu0
    %v845 = vadd.f32 0.0, %v844
    %v846 = vpop.f32.mrf.mxu0
    %847 = vdwg.mxu0
    %vm848 = vcmask 1024
    %849 = vst.msk [vmem:[%s4] sm:$0x3] %vm848, %v845
    // Predicated region
    $region30: #{tpu_custom_call.1} parent=1 // pred_check
      _
    $region31: #{tpu_custom_call.1} parent=1 // pred_check_branch
      %851 = sbr.rel (0) target = $region33
    $region32: #{tpu_custom_call.1} parent=1 // pred_region
      _
    $region33: #{tpu_custom_call.1} parent=1 // pred_fallthru
      _
    // Predicated region
    $region34: #{tpu_custom_call.1} parent=1 // pred_check
      _
    $region35: #{tpu_custom_call.1} parent=1 // pred_check_branch
      %853 = sbr.rel (0) target = $region37
    $region36: #{tpu_custom_call.1} parent=1 // pred_region
      _
    $region37: #{tpu_custom_call.1} parent=1 // pred_fallthru
      _
    %854 = vsyncpa [#allocation3], 1
    %855 = vsyncpa [#allocation5], 1

</llo_original>
